<compile_context>
chip_gen: v6e
topology: v6e:2x2x1
jax: 0.10.0
libtpu: 0.0.40
codegen_flags: <defaults>
</compile_context>

<pallas_src>
import jax
import jax.numpy as jnp
from jax.experimental import pallas as pl
from jax.experimental.pallas import tpu as pltpu


def _pick_tile(dim, preferred):
    """Largest multiple of 128 that is <= preferred and divides dim, else full dim."""
    if dim <= preferred:
        return dim
    t = (preferred // 128) * 128
    while t >= 128:
        if dim % t == 0:
            return t
        t -= 128
    return dim  # fall back: keep the full (possibly unaligned) dim resident


# --------------------- kernel 1: T = X @ U  (contract over num_document) ----

def _xu_kernel(x_ref, u_ref, t_ref):
    # Output block is resident across the reduction grid axis -> accumulator.
    @pl.when(pl.program_id(0) == 0)
    def _():
        t_ref[...] = jnp.zeros_like(t_ref)

    t_ref[...] += jnp.dot(
        x_ref[...], u_ref[...], preferred_element_type=jnp.float32
    )


def _xu_matmul(x, u, *, tk):
    f, d = x.shape
    _, c = u.shape
    grid_k = d // tk
    cost = pl.CostEstimate(
        flops=2 * f * d * c,
        transcendentals=0,
        bytes_accessed=4 * (f * d + d * c + f * c),
    )
    return pl.pallas_call(
        _xu_kernel,
        out_shape=jax.ShapeDtypeStruct((f, c), jnp.float32),
        grid_spec=pltpu.PrefetchScalarGridSpec(
            num_scalar_prefetch=0,
            grid=(grid_k,),
            in_specs=[
                pl.BlockSpec((f, tk), lambda k: (0, k)),   # X column slab
                pl.BlockSpec((tk, c), lambda k: (k, 0)),   # U row slab
            ],
            out_specs=pl.BlockSpec((f, c), lambda k: (0, 0)),  # resident acc
        ),
        compiler_params=pltpu.CompilerParams(
            dimension_semantics=("arbitrary",)  # reduction axis
        ),
        cost_estimate=cost,
    )(x, u)


# --------------------- kernel 2: Y = T @ V_T (tile num_document columns) ----

def _tv_kernel(t_ref, vt_ref, o_ref):
    o_ref[...] = jnp.dot(
        t_ref[...], vt_ref[...], preferred_element_type=jnp.float32
    ).astype(o_ref.dtype)


def _tv_matmul(t, v_t, *, tn):
    f, c = t.shape
    _, d = v_t.shape
    grid_n = d // tn
    cost = pl.CostEstimate(
        flops=2 * f * c * d,
        transcendentals=0,
        bytes_accessed=4 * (f * c + c * d + f * d),
    )
    return pl.pallas_call(
        _tv_kernel,
        out_shape=jax.ShapeDtypeStruct((f, d), jnp.float32),
        grid_spec=pltpu.PrefetchScalarGridSpec(
            num_scalar_prefetch=0,
            grid=(grid_n,),
            in_specs=[
                pl.BlockSpec((f, c), lambda j: (0, 0)),    # T resident (tiny)
                pl.BlockSpec((c, tn), lambda j: (0, j)),   # V_T column tile
            ],
            out_specs=pl.BlockSpec((f, tn), lambda j: (0, j)),  # lane-dense
        ),
        compiler_params=pltpu.CompilerParams(
            dimension_semantics=("parallel",)  # shard columns across TCs (v7x)
        ),
        cost_estimate=cost,
    )(t, v_t)


def cnmf_forward(x, u, v_t, *, tile_n=512, tile_k=512):
    """Computes X @ (U @ V_T) as (X @ U) @ V_T with two Pallas kernels."""
    num_feature, num_document = x.shape
    num_document_u, num_cluster = u.shape
    assert num_document_u == num_document
    assert v_t.shape == (num_cluster, num_document)

    tk = _pick_tile(num_document, tile_k)
    tn = _pick_tile(num_document, tile_n)

    t = _xu_matmul(x, u, tk=tk)          # (num_feature, num_cluster)
    y = _tv_matmul(t, v_t, tn=tn)        # (num_feature, num_document)
    return y


if __name__ == "__main__":
    # Small, self-consistent shapes for the CNMF problem.
    num_document = 128
    num_feature = 16
    num_cluster = 20

    key = jax.random.PRNGKey(0)
    kx, ku, kv = jax.random.split(key, 3)

    # X: data matrix (constant, like `matrix` passed to __init__).
    x = jax.random.uniform(kx, (num_feature, num_document), dtype=jnp.float32)
    # Parameters initialized as 0.01 * rand(...) to mirror the PyTorch init.
    u = 0.01 * jax.random.uniform(ku, (num_document, num_cluster), dtype=jnp.float32)
    v_t = 0.01 * jax.random.uniform(kv, (num_cluster, num_document), dtype=jnp.float32)

    forward = jax.jit(cnmf_forward)      # fuse the two custom calls into one dispatch
    y = forward(x, u, v_t)
    y = jax.block_until_ready(y)

    # Correctness check against plain JAX reference (torch.mm(X, torch.mm(U, V_T))).
    ref = x @ (u @ v_t)
    assert y.shape == (num_feature, num_document)
    assert jnp.allclose(y, ref, atol=1e-5, rtol=1e-5)

    print("KERNEL_OK")
</pallas_src>

<mosaic_0001>
module attributes {stable_mosaic.version = 11 : i64} {
  func.func @_xu_kernel(%arg0: i32, %arg1: memref<16x128xf32, #tpu.memory_space<vmem>>, %arg2: memref<128x20xf32, #tpu.memory_space<vmem>>, %arg3: memref<16x20xf32, #tpu.memory_space<vmem>>) attributes {dimension_semantics = [#tpu.dimension_semantics<arbitrary>], iteration_bounds = array<i64: 1>, scalar_prefetch = 0 : i64, scratch_operands = 0 : i64, tpu.core_type = #tpu.core_type<tc>, window_params = [{transform_indices = @transform_0, window_bounds = array<i64: 16, 128>}, {transform_indices = @transform_1, window_bounds = array<i64: 128, 20>}, {pipeline_mode = #tpu.pipeline_mode<synchronous>, transform_indices = @transform_2, window_bounds = array<i64: 16, 20>}]} {
    %c0_i32 = arith.constant 0 : i32
    %0 = arith.cmpi eq, %arg0, %c0_i32 : i32
    %1 = arith.extui %0 : i1 to i32
    %c0_i32_0 = arith.constant 0 : i32
    %2 = arith.cmpi ne, %1, %c0_i32_0 : i32
    scf.if %2 {
      %cst_8 = arith.constant 0.000000e+00 : f32
      %9 = vector.broadcast %cst_8 : f32 to vector<16x20xf32>
      %c0_9 = arith.constant 0 : index
      %c0_10 = arith.constant 0 : index
      %10 = vector.load %arg3[%c0_9, %c0_10] : memref<16x20xf32, #tpu.memory_space<vmem>>, vector<16x20xf32>
      tpu.vector_store %arg3[%c0_9, %c0_10], %9 {strides = array<i32>} : memref<16x20xf32, #tpu.memory_space<vmem>>, vector<16x20xf32>,
    } else {
    }
    %c0 = arith.constant 0 : index
    %c0_1 = arith.constant 0 : index
    %3 = vector.load %arg3[%c0, %c0_1] : memref<16x20xf32, #tpu.memory_space<vmem>>, vector<16x20xf32>
    %c0_2 = arith.constant 0 : index
    %c0_3 = arith.constant 0 : index
    %4 = vector.load %arg1[%c0_2, %c0_3] : memref<16x128xf32, #tpu.memory_space<vmem>>, vector<16x128xf32>
    %c0_4 = arith.constant 0 : index
    %c0_5 = arith.constant 0 : index
    %5 = vector.load %arg2[%c0_4, %c0_5] : memref<128x20xf32, #tpu.memory_space<vmem>>, vector<128x20xf32>
    %cst = arith.constant dense<0.000000e+00> : vector<16x20xf32>
    %6 = tpu.matmul %4, %5, %cst {dimension_numbers = #tpu.dot_dimension_numbers<[1], [0], [0], [1], [0, 0, 1, 1], [], []>} : vector<16x128xf32>, vector<128x20xf32>, vector<16x20xf32> -> vector<16x20xf32>
    %7 = arith.addf %3, %6 : vector<16x20xf32>
    %c0_6 = arith.constant 0 : index
    %c0_7 = arith.constant 0 : index
    %8 = vector.load %arg3[%c0_6, %c0_7] : memref<16x20xf32, #tpu.memory_space<vmem>>, vector<16x20xf32>
    tpu.vector_store %arg3[%c0_6, %c0_7], %7 {strides = array<i32>} : memref<16x20xf32, #tpu.memory_space<vmem>>, vector<16x20xf32>,
    return
  }
  func.func @transform_0(%arg0: i32) -> (i32, i32) {
    %c0_i32 = arith.constant 0 : i32
    %c0_i32_0 = arith.constant 0 : i32
    return %c0_i32, %arg0 : i32, i32
  }
  func.func @transform_1(%arg0: i32) -> (i32, i32) {
    %c0_i32 = arith.constant 0 : i32
    %c0_i32_0 = arith.constant 0 : i32
    return %arg0, %c0_i32 : i32, i32
  }
  func.func @transform_2(%arg0: i32) -> (i32, i32) {
    %c0_i32 = arith.constant 0 : i32
    %c0_i32_0 = arith.constant 0 : i32
    %c0_i32_1 = arith.constant 0 : i32
    return %c0_i32, %c0_i32_0 : i32, i32
  }
}

module attributes {stable_mosaic.version = 11 : i64} {
  func.func @_tv_kernel(%arg0: i32, %arg1: memref<16x20xf32, #tpu.memory_space<vmem>>, %arg2: memref<20x128xf32, #tpu.memory_space<vmem>>, %arg3: memref<16x128xf32, #tpu.memory_space<vmem>>) attributes {dimension_semantics = [#tpu.dimension_semantics<parallel>], iteration_bounds = array<i64: 1>, scalar_prefetch = 0 : i64, scratch_operands = 0 : i64, tpu.core_type = #tpu.core_type<tc>, window_params = [{pipeline_mode = #tpu.pipeline_mode<synchronous>, transform_indices = @transform_0, window_bounds = array<i64: 16, 20>}, {transform_indices = @transform_1, window_bounds = array<i64: 20, 128>}, {transform_indices = @transform_2, window_bounds = array<i64: 16, 128>}]} {
    %c0 = arith.constant 0 : index
    %c0_0 = arith.constant 0 : index
    %0 = vector.load %arg1[%c0, %c0_0] : memref<16x20xf32, #tpu.memory_space<vmem>>, vector<16x20xf32>
    %c0_1 = arith.constant 0 : index
    %c0_2 = arith.constant 0 : index
    %1 = vector.load %arg2[%c0_1, %c0_2] : memref<20x128xf32, #tpu.memory_space<vmem>>, vector<20x128xf32>
    %cst = arith.constant dense<0.000000e+00> : vector<16x128xf32>
    %2 = tpu.matmul %0, %1, %cst {dimension_numbers = #tpu.dot_dimension_numbers<[1], [0], [0], [1], [0, 0, 1, 1], [], []>} : vector<16x20xf32>, vector<20x128xf32>, vector<16x128xf32> -> vector<16x128xf32>
    %c0_3 = arith.constant 0 : index
    %c0_4 = arith.constant 0 : index
    %3 = vector.load %arg3[%c0_3, %c0_4] : memref<16x128xf32, #tpu.memory_space<vmem>>, vector<16x128xf32>
    tpu.vector_store %arg3[%c0_3, %c0_4], %2 {strides = array<i32>} : memref<16x128xf32, #tpu.memory_space<vmem>>, vector<16x128xf32>,
    return
  }
  func.func @transform_0(%arg0: i32) -> (i32, i32) {
    %c0_i32 = arith.constant 0 : i32
    %c0_i32_0 = arith.constant 0 : i32
    %c0_i32_1 = arith.constant 0 : i32
    return %c0_i32, %c0_i32_0 : i32, i32
  }
  func.func @transform_1(%arg0: i32) -> (i32, i32) {
    %c0_i32 = arith.constant 0 : i32
    %c0_i32_0 = arith.constant 0 : i32
    return %c0_i32, %arg0 : i32, i32
  }
  func.func @transform_2(%arg0: i32) -> (i32, i32) {
    %c0_i32 = arith.constant 0 : i32
    %c0_i32_0 = arith.constant 0 : i32
    return %c0_i32, %arg0 : i32, i32
  }
}

</mosaic_0001>

<llo_original>
// kernel: cnmf_forward.3
$region0: #{cnmf_forward.3}
  #allocation0 [shape = 'u32[]', space=smem, size = 0x4, offset = 0x4, fixed_abs, tag = 'smem constant byte address 0x4 - core index']
  #allocation1 [shape = 'u32[144,128]{1,0:T(1,128)}', space=vmem, size = 0x12000, scoped, tag = 'internal scratch']
  %s0 = inlined_call_operand.vmem [shape: f32[16,20], index: 0, kind: input, shape index: {}]
  %s1 = inlined_call_operand.vmem [shape: f32[20,128], index: 1, kind: input, shape index: {}]
  %s2 = inlined_call_operand.hbm [shape: f32[16,128], index: 2, kind: output, shape index: {}]
  %s3 = sld [smem:[#allocation0]]
  $region18: #{cnmf_forward.3} parent=0
    _
  %s5 = ssub.s32 1, %s3
  %s6 = scalar_select 0, %s5, %s3
  $region1: #{cnmf_forward.3} parent=0
    #allocation2 [shape = 'u8[8192]{0}', space=vmem, size = 0x2000, scoped, tag = 'output window, operand 0, single buffered']
    #allocation3 [shape = 's32[1]{0}', space=sflag, size = 0x4, scoped, tag = 'scoped memory for cnmf_forward.3']
    %7 = vsyncpa [#allocation3], 0
    // Predicated region
    $region2: #{cnmf_forward.3} parent=1 // pred_check
      _
    $region3: #{cnmf_forward.3} parent=1 // pred_check_branch
      %9 = sbr.rel (0) target = $region5
    $region4: #{cnmf_forward.3} parent=1 // pred_region
      _
    $region5: #{cnmf_forward.3} parent=1 // pred_fallthru
      _
    // Predicated region
    $region6: #{cnmf_forward.3} parent=1 // pred_check
      _
    $region7: #{cnmf_forward.3} parent=1 // pred_check_branch
      %11 = sbr.rel (0) target = $region9
    $region8: #{cnmf_forward.3} parent=1 // pred_region
      _
    $region9: #{cnmf_forward.3} parent=1 // pred_fallthru
      _
    %v12 = vld [vmem:[%s0] sm:$0xff]
    %v13 = vld [vmem:[%s0 + $0x8] sm:$0xff]
    %v14 = vld [vmem:[%s1] sm:$0xff]
    %v15 = vld [vmem:[%s1 + $0x8] sm:$0xff]
    %v16 = vld [vmem:[%s1 + $0x10] sm:$0xf]
    %vm17 = vcmask 162816
    %v19 = vsel %vm17, %v12, 0
    %v22 = vsel %vm17, %v13, 0
    %vm24 = vcmask 1043456
    %v26 = vsel %vm24, %v16, 0
    %28 = vmatprep.subr.mxu0 0.0
    %29 = vmatpush1.msra.mxu0 0.0
    %30 = vmatprep.subr.mxu0 0.0
    %31 = vmatpush1.msra.mxu0 0.0
    %32 = vmatprep.subr.mxu0 0.0
    %33 = vmatpush1.msra.mxu0 0.0
    %34 = vmatprep.subr.mxu0 0.0
    %35 = vmatpush1.msra.mxu0 0.0
    %36 = vmatprep.subr.mxu0 0.0
    %37 = vmatpush1.msra.mxu0 0.0
    %38 = vmatprep.subr.mxu0 0.0
    %39 = vmatpush1.msra.mxu0 0.0
    %40 = vmatprep.subr.mxu0 0.0
    %41 = vmatpush1.msra.mxu0 0.0
    %42 = vmatprep.subr.mxu0 0.0
    %43 = vmatpush1.msra.mxu0 0.0
    %44 = vmatprep.subr.mxu0 0.0
    %45 = vmatpush1.msra.mxu0 0.0
    %46 = vmatprep.subr.mxu0 0.0
    %47 = vmatpush1.msra.mxu0 0.0
    %48 = vmatprep.subr.mxu0 0.0
    %49 = vmatpush1.msra.mxu0 0.0
    %50 = vmatprep.subr.mxu0 0.0
    %51 = vmatpush1.msra.mxu0 0.0
    %52 = vmatprep.subr.mxu0 0.0
    %53 = vmatpush1.msra.mxu0 0.0
    %54 = vmatprep.subr.mxu0 0.0
    %55 = vmatpush1.msra.mxu0 %v26
    %56 = vmatprep.subr.mxu0 0.0
    %57 = vmatpush1.msra.mxu0 %v15
    %58 = vmatprep.subr.mxu0 0.0
    %59 = vmatpush1.msra.mxu0 %v14
    %60 = vmatprep.subr.mxu0 0.0
    %61 = vmatpush2.msra.mxu0 0.0
    %62 = vmatprep.subr.mxu0 0.0
    %63 = vmatpush2.msra.mxu0 0.0
    %64 = vmatprep.subr.mxu0 0.0
    %65 = vmatpush2.msra.mxu0 0.0
    %66 = vmatprep.subr.mxu0 0.0
    %67 = vmatpush2.msra.mxu0 0.0
    %68 = vmatprep.subr.mxu0 0.0
    %69 = vmatpush2.msra.mxu0 0.0
    %70 = vmatprep.subr.mxu0 0.0
    %71 = vmatpush2.msra.mxu0 0.0
    %72 = vmatprep.subr.mxu0 0.0
    %73 = vmatpush2.msra.mxu0 0.0
    %74 = vmatprep.subr.mxu0 0.0
    %75 = vmatpush2.msra.mxu0 0.0
    %76 = vmatprep.subr.mxu0 0.0
    %77 = vmatpush2.msra.mxu0 0.0
    %78 = vmatprep.subr.mxu0 0.0
    %79 = vmatpush2.msra.mxu0 0.0
    %80 = vmatprep.subr.mxu0 0.0
    %81 = vmatpush2.msra.mxu0 0.0
    %82 = vmatprep.subr.mxu0 0.0
    %83 = vmatpush2.msra.mxu0 0.0
    %84 = vmatprep.subr.mxu0 0.0
    %85 = vmatpush2.msra.mxu0 0.0
    %86 = vmatprep.subr.mxu0 0.0
    %87 = vmatpush2.msra.mxu0 0.0
    %88 = vmatprep.subr.mxu0 0.0
    %89 = vmatpush2.msra.mxu0 0.0
    %90 = vmatprep.subr.mxu0 0.0
    %91 = vmatpush2.msra.mxu0 0.0
    %92 = vmatprep.mubr.f32.mxu0 0.0
    %93 = vmatmul.mubr.f32.gmra.mxu0 %v19
    %v94 = vpop.f32.mrf.mxu0
    %v95 = vadd.f32 0.0, %v94
    %v96 = vpop.f32.mrf.mxu0
    %97 = vmatprep.mubr.f32.mxu0 0.0
    %98 = vmatmul.mubr.f32.gmra.mxu0 %v22
    %v99 = vpop.f32.mrf.mxu0
    %v100 = vadd.f32 0.0, %v99
    %v101 = vpop.f32.mrf.mxu0
    %102 = vdwg.mxu0
    %103 = vst [vmem:[#allocation2] sm:$0xff] %v95
    %104 = vst [vmem:[#allocation2 + $0x8] sm:$0xff] %v100
    // Predicated region
    $region10: #{cnmf_forward.3} parent=1 // pred_check
      _
    $region11: #{cnmf_forward.3} parent=1 // pred_check_branch
      %106 = sbr.rel (0) target = $region13
    $region12: #{cnmf_forward.3} parent=1 // pred_region
      %s108 = ssub.s32 256, 256
      %109 = vsyncadd [#allocation3], %s108
      %s110 = sshll.u32 [#allocation2], 4
      %s111 = int_to_ptr.vmem [resolvable:$true] %s110
      %116 = dma.vmem_to_hbm [thread:$0]  %s111, 256, %s2, [#allocation3], 128, 128, 8
    $region13: #{cnmf_forward.3} parent=1 // pred_fallthru
      _
    // Predicated region
    $region14: #{cnmf_forward.3} parent=1 // pred_check
      _
    $region15: #{cnmf_forward.3} parent=1 // pred_check_branch
      %118 = sbr.rel (0) target = $region17
    $region16: #{cnmf_forward.3} parent=1 // pred_region
      %119 = dma.done [#allocation3], 256
    $region17: #{cnmf_forward.3} parent=1 // pred_fallthru
      _
    %120 = vsyncpa [#allocation3], 1

// kernel: cnmf_forward.2
$region0: #{cnmf_forward.2}
  #allocation0 [shape = 'u32[]', space=smem, size = 0x4, offset = 0x4, fixed_abs, tag = 'smem constant byte address 0x4 - core index']
  #allocation1 [shape = 'u32[144,128]{1,0:T(1,128)}', space=vmem, size = 0x12000, scoped, tag = 'internal scratch']
  %s0 = inlined_call_operand.vmem [shape: f32[16,128], index: 0, kind: input, shape index: {}]
  %s1 = inlined_call_operand.vmem [shape: f32[128,20], index: 1, kind: input, shape index: {}]
  %s2 = inlined_call_operand.vmem [shape: f32[16,20], index: 2, kind: output, shape index: {}]
  %s3 = sld [smem:[#allocation0]]
  $region22: #{cnmf_forward.2} parent=0
    _
  %s5 = ssub.s32 1, %s3
  %s6 = scalar_select 0, %s5, %s3
  // Predicated region
  $region2: #{cnmf_forward.2} parent=0 // pred_check
    _
  $region3: #{cnmf_forward.2} parent=0 // pred_check_branch
    %8 = sbr.rel (0) target = $region5
  $region4: #{cnmf_forward.2} parent=0 // pred_region
    _
  $region5: #{cnmf_forward.2} parent=0 // pred_fallthru
    _
  // Predicated region
  $region6: #{cnmf_forward.2} parent=0 // pred_check
    _
  $region7: #{cnmf_forward.2} parent=0 // pred_check_branch
    %10 = sbr.rel (0) target = $region9
  $region8: #{cnmf_forward.2} parent=0 // pred_region
    _
  $region9: #{cnmf_forward.2} parent=0 // pred_fallthru
    _
  %p11 = scmp.eq.s32.totalorder 0, 0
  // Predicated region
  $region10: #{cnmf_forward.2} parent=0 // pred_check
    %p12 = pneg %p11
  $region11: #{cnmf_forward.2} parent=0 // pred_check_branch
    %14 = sbr.rel (%p12) target = $region13
  $region12: #{cnmf_forward.2} parent=0 // pred_region
    %vm15 = vcmask 162816
    %16 = vst.msk [vmem:[%s2] sm:$0xff] %vm15, 0.0
    %17 = vst.msk [vmem:[%s2 + $0x8] sm:$0xff] %vm15, 0.0
  $region13: #{cnmf_forward.2} parent=0 // pred_fallthru
    _
  %v18 = vld [vmem:[%s2] sm:$0xff]
  %v19 = vld [vmem:[%s2 + $0x8] sm:$0xff]
  %v20 = vld [vmem:[%s0] sm:$0xff]
  %v21 = vld [vmem:[%s0 + $0x8] sm:$0xff]
  %v22 = vld [vmem:[%s1] sm:$0xff]
  %v23 = vld [vmem:[%s1 + $0x8] sm:$0xff]
  %v24 = vld [vmem:[%s1 + $0x10] sm:$0xff]
  %v25 = vld [vmem:[%s1 + $0x18] sm:$0xff]
  %v26 = vld [vmem:[%s1 + $0x20] sm:$0xff]
  %v27 = vld [vmem:[%s1 + $0x28] sm:$0xff]
  %v28 = vld [vmem:[%s1 + $0x30] sm:$0xff]
  %v29 = vld [vmem:[%s1 + $0x38] sm:$0xff]
  %v30 = vld [vmem:[%s1 + $0x40] sm:$0xff]
  %v31 = vld [vmem:[%s1 + $0x48] sm:$0xff]
  %v32 = vld [vmem:[%s1 + $0x50] sm:$0xff]
  %v33 = vld [vmem:[%s1 + $0x58] sm:$0xff]
  %v34 = vld [vmem:[%s1 + $0x60] sm:$0xff]
  %v35 = vld [vmem:[%s1 + $0x68] sm:$0xff]
  %v36 = vld [vmem:[%s1 + $0x70] sm:$0xff]
  %v37 = vld [vmem:[%s1 + $0x78] sm:$0xff]
  %38 = vmatprep.subr.mxu0 0.0
  %39 = vmatpush1.msra.mxu0 %v37
  %40 = vmatprep.subr.mxu0 0.0
  %41 = vmatpush1.msra.mxu0 %v36
  %42 = vmatprep.subr.mxu0 0.0
  %43 = vmatpush1.msra.mxu0 %v35
  %44 = vmatprep.subr.mxu0 0.0
  %45 = vmatpush1.msra.mxu0 %v34
  %46 = vmatprep.subr.mxu0 0.0
  %47 = vmatpush1.msra.mxu0 %v33
  %48 = vmatprep.subr.mxu0 0.0
  %49 = vmatpush1.msra.mxu0 %v32
  %50 = vmatprep.subr.mxu0 0.0
  %51 = vmatpush1.msra.mxu0 %v31
  %52 = vmatprep.subr.mxu0 0.0
  %53 = vmatpush1.msra.mxu0 %v30
  %54 = vmatprep.subr.mxu0 0.0
  %55 = vmatpush1.msra.mxu0 %v29
  %56 = vmatprep.subr.mxu0 0.0
  %57 = vmatpush1.msra.mxu0 %v28
  %58 = vmatprep.subr.mxu0 0.0
  %59 = vmatpush1.msra.mxu0 %v27
  %60 = vmatprep.subr.mxu0 0.0
  %61 = vmatpush1.msra.mxu0 %v26
  %62 = vmatprep.subr.mxu0 0.0
  %63 = vmatpush1.msra.mxu0 %v25
  %64 = vmatprep.subr.mxu0 0.0
  %65 = vmatpush1.msra.mxu0 %v24
  %66 = vmatprep.subr.mxu0 0.0
  %67 = vmatpush1.msra.mxu0 %v23
  %68 = vmatprep.subr.mxu0 0.0
  %69 = vmatpush1.msra.mxu0 %v22
  %70 = vmatprep.subr.mxu0 0.0
  %71 = vmatpush2.msra.mxu0 0.0
  %72 = vmatprep.subr.mxu0 0.0
  %73 = vmatpush2.msra.mxu0 0.0
  %74 = vmatprep.subr.mxu0 0.0
  %75 = vmatpush2.msra.mxu0 0.0
  %76 = vmatprep.subr.mxu0 0.0
  %77 = vmatpush2.msra.mxu0 0.0
  %78 = vmatprep.subr.mxu0 0.0
  %79 = vmatpush2.msra.mxu0 0.0
  %80 = vmatprep.subr.mxu0 0.0
  %81 = vmatpush2.msra.mxu0 0.0
  %82 = vmatprep.subr.mxu0 0.0
  %83 = vmatpush2.msra.mxu0 0.0
  %84 = vmatprep.subr.mxu0 0.0
  %85 = vmatpush2.msra.mxu0 0.0
  %86 = vmatprep.subr.mxu0 0.0
  %87 = vmatpush2.msra.mxu0 0.0
  %88 = vmatprep.subr.mxu0 0.0
  %89 = vmatpush2.msra.mxu0 0.0
  %90 = vmatprep.subr.mxu0 0.0
  %91 = vmatpush2.msra.mxu0 0.0
  %92 = vmatprep.subr.mxu0 0.0
  %93 = vmatpush2.msra.mxu0 0.0
  %94 = vmatprep.subr.mxu0 0.0
  %95 = vmatpush2.msra.mxu0 0.0
  %96 = vmatprep.subr.mxu0 0.0
  %97 = vmatpush2.msra.mxu0 0.0
  %98 = vmatprep.subr.mxu0 0.0
  %99 = vmatpush2.msra.mxu0 0.0
  %100 = vmatprep.subr.mxu0 0.0
  %101 = vmatpush2.msra.mxu0 0.0
  %102 = vmatprep.mubr.f32.mxu0 0.0
  %103 = vmatmul.mubr.f32.gmra.mxu0 %v20
  %v104 = vpop.f32.mrf.mxu0
  %v105 = vadd.f32 0.0, %v104
  %v106 = vpop.f32.mrf.mxu0
  %107 = vmatprep.mubr.f32.mxu0 0.0
  %108 = vmatmul.mubr.f32.gmra.mxu0 %v21
  %v109 = vpop.f32.mrf.mxu0
  %v110 = vadd.f32 0.0, %v109
  %v111 = vpop.f32.mrf.mxu0
  %112 = vdwg.mxu0
  %v113 = vadd.f32 %v18, %v105
  %v114 = vadd.f32 %v19, %v110
  %vm115 = vcmask 162816
  %116 = vst.msk [vmem:[%s2] sm:$0xff] %vm115, %v113
  %117 = vst.msk [vmem:[%s2 + $0x8] sm:$0xff] %vm115, %v114
  // Predicated region
  $region14: #{cnmf_forward.2} parent=0 // pred_check
    _
  $region15: #{cnmf_forward.2} parent=0 // pred_check_branch
    %119 = sbr.rel (0) target = $region17
  $region16: #{cnmf_forward.2} parent=0 // pred_region
    _
  $region17: #{cnmf_forward.2} parent=0 // pred_fallthru
    _
  // Predicated region
  $region18: #{cnmf_forward.2} parent=0 // pred_check
    _
  $region19: #{cnmf_forward.2} parent=0 // pred_check_branch
    %121 = sbr.rel (0) target = $region21
  $region20: #{cnmf_forward.2} parent=0 // pred_region
    _
  $region21: #{cnmf_forward.2} parent=0 // pred_fallthru
    _

</llo_original>
